<compile_context>
chip_gen: v6e
topology: v6e:2x2x1
jax: 0.10.0
libtpu: 0.0.40
codegen_flags: <defaults>
</compile_context>

<pallas_src>
import functools

import jax
import jax.numpy as jnp
from jax.experimental import pallas as pl
from jax.experimental.pallas import tpu as pltpu

LANE = 128


def _round_up(n, m):
    return ((n + m - 1) // m) * m


def _mlp_kernel(x_ref, w1, b1, w2, b2, w3, b3, w4, b4, o_ref):
    """One batch tile of DeepMLP: 4 chained bf16 matmuls (f32 acc), ReLU between.

    BatchNorm is already folded into the weights/biases, Dropout is identity (eval).
    """
    h = x_ref[...]  # bf16 (TILE_B, IN_P)

    def lin_relu(h, w_ref, b_ref):
        y = jnp.dot(h, w_ref[...], preferred_element_type=jnp.float32) + b_ref[...]
        # Cast back to bf16 so the next matmul runs on the fast MXU path.
        return jnp.maximum(y, 0.0).astype(jnp.bfloat16)

    h = lin_relu(h, w1, b1)
    h = lin_relu(h, w2, b2)
    h = lin_relu(h, w3, b3)
    o_ref[...] = (jnp.dot(h, w4[...], preferred_element_type=jnp.float32)
                  + b4[...]).astype(o_ref.dtype)


def deep_mlp_pallas(x, params, output_size, tile_b=256):
    """x: (B, sequence_length, input_size) float32.

    params: [w1,b1,w2,b2,w3,b3,w4,b4] already BN-folded, lane-padded, weights bf16,
    biases f32 of shape (1, width_padded) (produced by fold_and_pad_params).
    Returns (B, output_size) float32.
    """
    B = x.shape[0]
    w1, w4 = params[0], params[-2]
    in_p, out_p = w1.shape[0], w4.shape[1]

    x_flat = x.reshape(B, -1)                      # nn.Flatten()
    in_dim = x_flat.shape[1]

    # bf16 min tile is (16, 128): keep the batch tile a multiple of 16 and don't
    # overshoot the (padded) batch for small inputs.
    tile_b = min(tile_b, _round_up(B, 16))
    b_pad = _round_up(B, tile_b)

    x_flat = jnp.pad(x_flat, ((0, b_pad - B), (0, in_p - in_dim))).astype(jnp.bfloat16)

    grid = (b_pad // tile_b,)
    x_spec = pl.BlockSpec((tile_b, in_p), lambda i: (i, 0))
    out_spec = pl.BlockSpec((tile_b, out_p), lambda i: (i, 0))
    # Weights/biases: full arrays, constant block index -> VMEM-resident across steps.
    # TODO(synk): the four (1, width) bias refs could be concatenated into one array
    #             to shave a few padded (8,128) VMEM tiles of fixed overhead.
    param_specs = [pl.BlockSpec(p.shape, lambda i: (0, 0)) for p in params]

    out = pl.pallas_call(
        _mlp_kernel,
        out_shape=jax.ShapeDtypeStruct((b_pad, out_p), jnp.float32),
        grid=grid,
        in_specs=[x_spec] + param_specs,
        out_specs=out_spec,
        compiler_params=pltpu.CompilerParams(
            dimension_semantics=("parallel",),        # batch tiles are independent
            vmem_limit_bytes=48 * 1024 * 1024,        # explicit budget; fits v7x 64 MiB
        ),
    )(x_flat, *params)

    return out[:B, :output_size]


def make_raw_params(key, flattened_input, hidden_size, output_size):
    """Deterministic synthetic DeepMLP parameters (torch-equivalent, eval mode).

    Weights are stored as (in, out) (transpose of torch's nn.Linear layout).
    Returns a list of (w, b, bn_scale, bn_shift) per Linear; last layer has no BN.
    """
    widths = [flattened_input, hidden_size * 2, hidden_size, hidden_size // 2, output_size]
    eps = 1e-5
    keys = jax.random.split(key, 4 * 6)
    layers = []
    for i in range(4):
        fin, fout = widths[i], widths[i + 1]
        kw, kb, kg, kbe, km, kv = keys[6 * i:6 * i + 6]
        w = jax.random.normal(kw, (fin, fout), jnp.float32) / jnp.sqrt(fin)
        b = jax.random.normal(kb, (fout,), jnp.float32) * 0.05
        if i < 3:  # BatchNorm1d follows the first three Linear+ReLU blocks
            gamma = 1.0 + 0.1 * jax.random.normal(kg, (fout,), jnp.float32)
            beta = 0.1 * jax.random.normal(kbe, (fout,), jnp.float32)
            rmean = 0.1 * jax.random.normal(km, (fout,), jnp.float32)
            rvar = jnp.abs(1.0 + 0.1 * jax.random.normal(kv, (fout,), jnp.float32))
            scale = gamma / jnp.sqrt(rvar + eps)      # eval-mode BN as affine
            shift = beta - rmean * scale
            layers.append((w, b, scale, shift))
        else:
            layers.append((w, b, None, None))
    return layers


def fold_and_pad_params(layers):
    """Fold eval-mode BN into the following Linear and pad feature dims to 128 lanes.

        (relu(y)*s + t) @ W + b  ==  relu(y) @ (diag(s) @ W) + (t @ W + b)

    Weights are cast to bf16 once here; biases stay f32 (added to the f32 accumulator).
    Zero padding is exact: padded activation columns are 0 and padded weight rows are 0.
    """
    params = []
    prev_scale, prev_shift = None, None
    for (w, b, scale, shift) in layers:
        if prev_scale is not None:
            b = b + prev_shift @ w                 # t @ W  (original W)
            w = w * prev_scale[:, None]            # diag(s) @ W
        fin, fout = w.shape
        fin_p, fout_p = _round_up(fin, LANE), _round_up(fout, LANE)
        w_p = jnp.zeros((fin_p, fout_p), jnp.float32).at[:fin, :fout].set(w)
        b_p = jnp.zeros((1, fout_p), jnp.float32).at[0, :fout].set(b)
        params += [w_p.astype(jnp.bfloat16), b_p]
        prev_scale, prev_shift = scale, shift
    return params


def reference_forward(x, layers):
    """Pure-JAX f32 eval-mode DeepMLP (Linear -> ReLU -> BN -> Dropout(identity))."""
    B = x.shape[0]
    h = x.reshape(B, -1)
    for (w, b, scale, shift) in layers:
        h = h @ w + b
        if scale is not None:
            h = jnp.maximum(h, 0.0) * scale + shift
    return h


if __name__ == "__main__":
    # Small shapes consistent with the module's forward.
    batch = 8
    input_size = 4
    sequence_length = 8
    hidden_size = 32
    output_size = 4
    flattened_input = input_size * sequence_length  # 32

    key = jax.random.PRNGKey(0)
    kx, kp = jax.random.split(key)
    x = jax.random.normal(kx, (batch, sequence_length, input_size), jnp.float32)

    layers = make_raw_params(kp, flattened_input, hidden_size, output_size)
    params = fold_and_pad_params(layers)

    run = jax.jit(functools.partial(deep_mlp_pallas, output_size=output_size))
    out = run(x, params)
    jax.block_until_ready(out)

    ref = reference_forward(x, layers)
    assert out.shape == (batch, output_size), out.shape
    # bf16 matmuls (f32 accumulation) vs an all-f32 reference: a few-percent tolerance.
    assert jnp.allclose(out, ref, atol=5e-2, rtol=5e-2), float(jnp.max(jnp.abs(out - ref)))

    print("KERNEL_OK")
</pallas_src>

<mosaic_0001>
module attributes {stable_mosaic.version = 11 : i64} {
  func.func @_mlp_kernel(%arg0: i32, %arg1: memref<16x128xbf16, #tpu.memory_space<vmem>>, %arg2: memref<128x128xbf16, #tpu.memory_space<vmem>>, %arg3: memref<1x128xf32, #tpu.memory_space<vmem>>, %arg4: memref<128x128xbf16, #tpu.memory_space<vmem>>, %arg5: memref<1x128xf32, #tpu.memory_space<vmem>>, %arg6: memref<128x128xbf16, #tpu.memory_space<vmem>>, %arg7: memref<1x128xf32, #tpu.memory_space<vmem>>, %arg8: memref<128x128xbf16, #tpu.memory_space<vmem>>, %arg9: memref<1x128xf32, #tpu.memory_space<vmem>>, %arg10: memref<16x128xf32, #tpu.memory_space<vmem>>) attributes {dimension_semantics = [#tpu.dimension_semantics<parallel>], iteration_bounds = array<i64: 1>, scalar_prefetch = 0 : i64, scratch_operands = 0 : i64, tpu.core_type = #tpu.core_type<tc>, window_params = [{transform_indices = @transform_0, window_bounds = array<i64: 16, 128>}, {pipeline_mode = #tpu.pipeline_mode<synchronous>, transform_indices = @transform_1, window_bounds = array<i64: 128, 128>}, {pipeline_mode = #tpu.pipeline_mode<synchronous>, transform_indices = @transform_2, window_bounds = array<i64: 1, 128>}, {pipeline_mode = #tpu.pipeline_mode<synchronous>, transform_indices = @transform_3, window_bounds = array<i64: 128, 128>}, {pipeline_mode = #tpu.pipeline_mode<synchronous>, transform_indices = @transform_4, window_bounds = array<i64: 1, 128>}, {pipeline_mode = #tpu.pipeline_mode<synchronous>, transform_indices = @transform_5, window_bounds = array<i64: 128, 128>}, {pipeline_mode = #tpu.pipeline_mode<synchronous>, transform_indices = @transform_6, window_bounds = array<i64: 1, 128>}, {pipeline_mode = #tpu.pipeline_mode<synchronous>, transform_indices = @transform_7, window_bounds = array<i64: 128, 128>}, {pipeline_mode = #tpu.pipeline_mode<synchronous>, transform_indices = @transform_8, window_bounds = array<i64: 1, 128>}, {transform_indices = @transform_9, window_bounds = array<i64: 16, 128>}]} {
    %c0 = arith.constant 0 : index
    %c0_0 = arith.constant 0 : index
    %0 = vector.load %arg1[%c0, %c0_0] : memref<16x128xbf16, #tpu.memory_space<vmem>>, vector<16x128xbf16>
    %c0_1 = arith.constant 0 : index
    %c0_2 = arith.constant 0 : index
    %1 = vector.load %arg2[%c0_1, %c0_2] : memref<128x128xbf16, #tpu.memory_space<vmem>>, vector<128x128xbf16>
    %cst = arith.constant dense<0.000000e+00> : vector<16x128xf32>
    %2 = tpu.matmul %0, %1, %cst {dimension_numbers = #tpu.dot_dimension_numbers<[1], [0], [0], [1], [0, 0, 1, 1], [], []>} : vector<16x128xbf16>, vector<128x128xbf16>, vector<16x128xf32> -> vector<16x128xf32>
    %c0_3 = arith.constant 0 : index
    %c0_4 = arith.constant 0 : index
    %3 = vector.load %arg3[%c0_3, %c0_4] : memref<1x128xf32, #tpu.memory_space<vmem>>, vector<1x128xf32>
    %4 = vector.broadcast %3 : vector<1x128xf32> to vector<16x128xf32>
    %5 = arith.addf %2, %4 : vector<16x128xf32>
    %cst_5 = arith.constant 0.000000e+00 : f32
    %6 = vector.broadcast %cst_5 : f32 to vector<16x128xf32>
    %7 = arith.maximumf %5, %6 : vector<16x128xf32>
    %8 = arith.truncf %7 : vector<16x128xf32> to vector<16x128xbf16>
    %c0_6 = arith.constant 0 : index
    %c0_7 = arith.constant 0 : index
    %9 = vector.load %arg4[%c0_6, %c0_7] : memref<128x128xbf16, #tpu.memory_space<vmem>>, vector<128x128xbf16>
    %cst_8 = arith.constant dense<0.000000e+00> : vector<16x128xf32>
    %10 = tpu.matmul %8, %9, %cst_8 {dimension_numbers = #tpu.dot_dimension_numbers<[1], [0], [0], [1], [0, 0, 1, 1], [], []>} : vector<16x128xbf16>, vector<128x128xbf16>, vector<16x128xf32> -> vector<16x128xf32>
    %c0_9 = arith.constant 0 : index
    %c0_10 = arith.constant 0 : index
    %11 = vector.load %arg5[%c0_9, %c0_10] : memref<1x128xf32, #tpu.memory_space<vmem>>, vector<1x128xf32>
    %12 = vector.broadcast %11 : vector<1x128xf32> to vector<16x128xf32>
    %13 = arith.addf %10, %12 : vector<16x128xf32>
    %cst_11 = arith.constant 0.000000e+00 : f32
    %14 = vector.broadcast %cst_11 : f32 to vector<16x128xf32>
    %15 = arith.maximumf %13, %14 : vector<16x128xf32>
    %16 = arith.truncf %15 : vector<16x128xf32> to vector<16x128xbf16>
    %c0_12 = arith.constant 0 : index
    %c0_13 = arith.constant 0 : index
    %17 = vector.load %arg6[%c0_12, %c0_13] : memref<128x128xbf16, #tpu.memory_space<vmem>>, vector<128x128xbf16>
    %cst_14 = arith.constant dense<0.000000e+00> : vector<16x128xf32>
    %18 = tpu.matmul %16, %17, %cst_14 {dimension_numbers = #tpu.dot_dimension_numbers<[1], [0], [0], [1], [0, 0, 1, 1], [], []>} : vector<16x128xbf16>, vector<128x128xbf16>, vector<16x128xf32> -> vector<16x128xf32>
    %c0_15 = arith.constant 0 : index
    %c0_16 = arith.constant 0 : index
    %19 = vector.load %arg7[%c0_15, %c0_16] : memref<1x128xf32, #tpu.memory_space<vmem>>, vector<1x128xf32>
    %20 = vector.broadcast %19 : vector<1x128xf32> to vector<16x128xf32>
    %21 = arith.addf %18, %20 : vector<16x128xf32>
    %cst_17 = arith.constant 0.000000e+00 : f32
    %22 = vector.broadcast %cst_17 : f32 to vector<16x128xf32>
    %23 = arith.maximumf %21, %22 : vector<16x128xf32>
    %24 = arith.truncf %23 : vector<16x128xf32> to vector<16x128xbf16>
    %c0_18 = arith.constant 0 : index
    %c0_19 = arith.constant 0 : index
    %25 = vector.load %arg8[%c0_18, %c0_19] : memref<128x128xbf16, #tpu.memory_space<vmem>>, vector<128x128xbf16>
    %cst_20 = arith.constant dense<0.000000e+00> : vector<16x128xf32>
    %26 = tpu.matmul %24, %25, %cst_20 {dimension_numbers = #tpu.dot_dimension_numbers<[1], [0], [0], [1], [0, 0, 1, 1], [], []>} : vector<16x128xbf16>, vector<128x128xbf16>, vector<16x128xf32> -> vector<16x128xf32>
    %c0_21 = arith.constant 0 : index
    %c0_22 = arith.constant 0 : index
    %27 = vector.load %arg9[%c0_21, %c0_22] : memref<1x128xf32, #tpu.memory_space<vmem>>, vector<1x128xf32>
    %28 = vector.broadcast %27 : vector<1x128xf32> to vector<16x128xf32>
    %29 = arith.addf %26, %28 : vector<16x128xf32>
    %c0_23 = arith.constant 0 : index
    %c0_24 = arith.constant 0 : index
    %30 = vector.load %arg10[%c0_23, %c0_24] : memref<16x128xf32, #tpu.memory_space<vmem>>, vector<16x128xf32>
    tpu.vector_store %arg10[%c0_23, %c0_24], %29 {strides = array<i32>} : memref<16x128xf32, #tpu.memory_space<vmem>>, vector<16x128xf32>,
    return
  }
  func.func @transform_0(%arg0: i32) -> (i32, i32) {
    %c0_i32 = arith.constant 0 : i32
    %c0_i32_0 = arith.constant 0 : i32
    return %arg0, %c0_i32 : i32, i32
  }
  func.func @transform_1(%arg0: i32) -> (i32, i32) {
    %c0_i32 = arith.constant 0 : i32
    %c0_i32_0 = arith.constant 0 : i32
    %c0_i32_1 = arith.constant 0 : i32
    return %c0_i32, %c0_i32_0 : i32, i32
  }
  func.func @transform_2(%arg0: i32) -> (i32, i32) {
    %c0_i32 = arith.constant 0 : i32
    %c0_i32_0 = arith.constant 0 : i32
    %c0_i32_1 = arith.constant 0 : i32
    return %c0_i32, %c0_i32_0 : i32, i32
  }
  func.func @transform_3(%arg0: i32) -> (i32, i32) {
    %c0_i32 = arith.constant 0 : i32
    %c0_i32_0 = arith.constant 0 : i32
    %c0_i32_1 = arith.constant 0 : i32
    return %c0_i32, %c0_i32_0 : i32, i32
  }
  func.func @transform_4(%arg0: i32) -> (i32, i32) {
    %c0_i32 = arith.constant 0 : i32
    %c0_i32_0 = arith.constant 0 : i32
    %c0_i32_1 = arith.constant 0 : i32
    return %c0_i32, %c0_i32_0 : i32, i32
  }
  func.func @transform_5(%arg0: i32) -> (i32, i32) {
    %c0_i32 = arith.constant 0 : i32
    %c0_i32_0 = arith.constant 0 : i32
    %c0_i32_1 = arith.constant 0 : i32
    return %c0_i32, %c0_i32_0 : i32, i32
  }
  func.func @transform_6(%arg0: i32) -> (i32, i32) {
    %c0_i32 = arith.constant 0 : i32
    %c0_i32_0 = arith.constant 0 : i32
    %c0_i32_1 = arith.constant 0 : i32
    return %c0_i32, %c0_i32_0 : i32, i32
  }
  func.func @transform_7(%arg0: i32) -> (i32, i32) {
    %c0_i32 = arith.constant 0 : i32
    %c0_i32_0 = arith.constant 0 : i32
    %c0_i32_1 = arith.constant 0 : i32
    return %c0_i32, %c0_i32_0 : i32, i32
  }
  func.func @transform_8(%arg0: i32) -> (i32, i32) {
    %c0_i32 = arith.constant 0 : i32
    %c0_i32_0 = arith.constant 0 : i32
    %c0_i32_1 = arith.constant 0 : i32
    return %c0_i32, %c0_i32_0 : i32, i32
  }
  func.func @transform_9(%arg0: i32) -> (i32, i32) {
    %c0_i32 = arith.constant 0 : i32
    %c0_i32_0 = arith.constant 0 : i32
    return %arg0, %c0_i32 : i32, i32
  }
}

</mosaic_0001>

<llo_original>
// kernel: deep_mlp_pallas.1
$region0: #{deep_mlp_pallas.1}
  #allocation0 [shape = 'u32[]', space=smem, size = 0x4, offset = 0x4, fixed_abs, tag = 'smem constant byte address 0x4 - core index']
  #allocation1 [shape = 'u32[144,128]{1,0:T(1,128)}', space=vmem, size = 0x12000, scoped, tag = 'internal scratch']
  %s0 = inlined_call_operand.vmem [shape: bf16[16,128], index: 0, kind: input, shape index: {}]
  %s1 = inlined_call_operand.vmem [shape: bf16[128,128], index: 1, kind: input, shape index: {}]
  %s2 = inlined_call_operand.vmem [shape: f32[1,128], index: 2, kind: input, shape index: {}]
  %s3 = inlined_call_operand.hbm [shape: bf16[128,128], index: 3, kind: input, shape index: {}]
  %s4 = inlined_call_operand.vmem [shape: f32[1,128], index: 4, kind: input, shape index: {}]
  %s5 = inlined_call_operand.hbm [shape: bf16[128,128], index: 5, kind: input, shape index: {}]
  %s6 = inlined_call_operand.vmem [shape: f32[1,128], index: 6, kind: input, shape index: {}]
  %s7 = inlined_call_operand.hbm [shape: bf16[128,128], index: 7, kind: input, shape index: {}]
  %s8 = inlined_call_operand.vmem [shape: f32[1,128], index: 8, kind: input, shape index: {}]
  %s9 = inlined_call_operand.vmem [shape: f32[16,128], index: 9, kind: output, shape index: {}]
  %s10 = sld [smem:[#allocation0]]
  $region58: #{deep_mlp_pallas.1} parent=0
    _
  %s12 = ssub.s32 1, %s10
  %s13 = scalar_select 0, %s12, %s10
  $region1: #{deep_mlp_pallas.1} parent=0
    #allocation2 [shape = 'u8[32768]{0}', space=vmem, size = 0x8000, scoped, tag = 'input window, operand 3, single buffered']
    #allocation3 [shape = 's32[1]{0}', space=sflag, size = 0x4, scoped, tag = 'scoped memory for deep_mlp_pallas.1']
    #allocation4 [shape = 'u8[32768]{0}', space=vmem, size = 0x8000, scoped, tag = 'input window, operand 5, single buffered']
    #allocation5 [shape = 's32[1]{0}', space=sflag, size = 0x4, scoped, tag = 'scoped memory for deep_mlp_pallas.1']
    #allocation6 [shape = 'u8[32768]{0}', space=vmem, size = 0x8000, scoped, tag = 'input window, operand 7, single buffered']
    %14 = vsyncpa [#allocation3], 0
    %15 = vsyncpa [#allocation5], 0
    // Predicated region
    $region2: #{deep_mlp_pallas.1} parent=1 // pred_check
      _
    $region3: #{deep_mlp_pallas.1} parent=1 // pred_check_branch
      %17 = sbr.rel (0) target = $region5
    $region4: #{deep_mlp_pallas.1} parent=1 // pred_region
      _
    $region5: #{deep_mlp_pallas.1} parent=1 // pred_fallthru
      _
    // Predicated region
    $region6: #{deep_mlp_pallas.1} parent=1 // pred_check
      _
    $region7: #{deep_mlp_pallas.1} parent=1 // pred_check_branch
      %19 = sbr.rel (0) target = $region9
    $region8: #{deep_mlp_pallas.1} parent=1 // pred_region
      _
    $region9: #{deep_mlp_pallas.1} parent=1 // pred_fallthru
      _
    // Predicated region
    $region10: #{deep_mlp_pallas.1} parent=1 // pred_check
      _
    $region11: #{deep_mlp_pallas.1} parent=1 // pred_check_branch
      %21 = sbr.rel (0) target = $region13
    $region12: #{deep_mlp_pallas.1} parent=1 // pred_region
      _
    $region13: #{deep_mlp_pallas.1} parent=1 // pred_fallthru
      _
    // Predicated region
    $region14: #{deep_mlp_pallas.1} parent=1 // pred_check
      _
    $region15: #{deep_mlp_pallas.1} parent=1 // pred_check_branch
      %23 = sbr.rel (0) target = $region17
    $region16: #{deep_mlp_pallas.1} parent=1 // pred_region
      %s25 = ssub.s32 1024, 1024
      %26 = vsyncadd [#allocation3], %s25
      %s27 = sshll.u32 [#allocation2], 4
      %s28 = int_to_ptr.vmem [resolvable:$true] %s27
      %33 = dma.hbm_to_vmem [thread:$0]  %s3, 1024, %s28, [#allocation3], 64, 64, 4
    $region17: #{deep_mlp_pallas.1} parent=1 // pred_fallthru
      _
    // Predicated region
    $region18: #{deep_mlp_pallas.1} parent=1 // pred_check
      _
    $region19: #{deep_mlp_pallas.1} parent=1 // pred_check_branch
      %35 = sbr.rel (0) target = $region21
    $region20: #{deep_mlp_pallas.1} parent=1 // pred_region
      _
    $region21: #{deep_mlp_pallas.1} parent=1 // pred_fallthru
      _
    // Predicated region
    $region22: #{deep_mlp_pallas.1} parent=1 // pred_check
      _
    $region23: #{deep_mlp_pallas.1} parent=1 // pred_check_branch
      %37 = sbr.rel (0) target = $region25
    $region24: #{deep_mlp_pallas.1} parent=1 // pred_region
      %s39 = ssub.s32 1024, 1024
      %40 = vsyncadd [#allocation5], %s39
      %s41 = sshll.u32 [#allocation4], 4
      %s42 = int_to_ptr.vmem [resolvable:$true] %s41
      %47 = dma.hbm_to_vmem [thread:$0]  %s5, 1024, %s42, [#allocation5], 64, 64, 4
    $region25: #{deep_mlp_pallas.1} parent=1 // pred_fallthru
      _
    // Predicated region
    $region26: #{deep_mlp_pallas.1} parent=1 // pred_check
      _
    $region27: #{deep_mlp_pallas.1} parent=1 // pred_check_branch
      %49 = sbr.rel (0) target = $region29
    $region28: #{deep_mlp_pallas.1} parent=1 // pred_region
      _
    $region29: #{deep_mlp_pallas.1} parent=1 // pred_fallthru
      _
    // Predicated region
    $region30: #{deep_mlp_pallas.1} parent=1 // pred_check
      _
    $region31: #{deep_mlp_pallas.1} parent=1 // pred_check_branch
      %51 = sbr.rel (0) target = $region33
    $region32: #{deep_mlp_pallas.1} parent=1 // pred_region
      %s53 = ssub.s32 1024, 1024
      %54 = vsyncadd [#allocation5], %s53
      %s55 = sshll.u32 [#allocation6], 4
      %s56 = int_to_ptr.vmem [resolvable:$true] %s55
      %61 = dma.hbm_to_vmem [thread:$0]  %s7, 1024, %s56, [#allocation5], 64, 64, 4
    $region33: #{deep_mlp_pallas.1} parent=1 // pred_fallthru
      _
    // Predicated region
    $region34: #{deep_mlp_pallas.1} parent=1 // pred_check
      _
    $region35: #{deep_mlp_pallas.1} parent=1 // pred_check_branch
      %63 = sbr.rel (0) target = $region37
    $region36: #{deep_mlp_pallas.1} parent=1 // pred_region
      _
    $region37: #{deep_mlp_pallas.1} parent=1 // pred_fallthru
      _
    // Predicated region
    $region38: #{deep_mlp_pallas.1} parent=1 // pred_check
      _
    $region39: #{deep_mlp_pallas.1} parent=1 // pred_check_branch
      %65 = sbr.rel (0) target = $region41
    $region40: #{deep_mlp_pallas.1} parent=1 // pred_region
      %66 = dma.done [#allocation3], 1024
    $region41: #{deep_mlp_pallas.1} parent=1 // pred_fallthru
      _
    // Predicated region
    $region42: #{deep_mlp_pallas.1} parent=1 // pred_check
      _
    $region43: #{deep_mlp_pallas.1} parent=1 // pred_check_branch
      %68 = sbr.rel (0) target = $region45
    $region44: #{deep_mlp_pallas.1} parent=1 // pred_region
      %69 = dma.done [#allocation5], 1024
    $region45: #{deep_mlp_pallas.1} parent=1 // pred_fallthru
      _
    // Predicated region
    $region46: #{deep_mlp_pallas.1} parent=1 // pred_check
      _
    $region47: #{deep_mlp_pallas.1} parent=1 // pred_check_branch
      %71 = sbr.rel (0) target = $region49
    $region48: #{deep_mlp_pallas.1} parent=1 // pred_region
      %72 = dma.done [#allocation5], 1024
    $region49: #{deep_mlp_pallas.1} parent=1 // pred_fallthru
      _
    %v74 = vld [vmem:[%s0] sm:$0xf]
    %v75 = vld [vmem:[%s0 + $0x4] sm:$0xf]
    %v76 = vld [vmem:[%s1] sm:$0xf]
    %v77 = vld [vmem:[%s1 + $0x4] sm:$0xf]
    %v78 = vld [vmem:[%s1 + $0x8] sm:$0xf]
    %v79 = vld [vmem:[%s1 + $0xc] sm:$0xf]
    %v80 = vld [vmem:[%s1 + $0x10] sm:$0xf]
    %v81 = vld [vmem:[%s1 + $0x14] sm:$0xf]
    %v82 = vld [vmem:[%s1 + $0x18] sm:$0xf]
    %v83 = vld [vmem:[%s1 + $0x1c] sm:$0xf]
    %v84 = vld [vmem:[%s1 + $0x20] sm:$0xf]
    %v85 = vld [vmem:[%s1 + $0x24] sm:$0xf]
    %v86 = vld [vmem:[%s1 + $0x28] sm:$0xf]
    %v87 = vld [vmem:[%s1 + $0x2c] sm:$0xf]
    %v88 = vld [vmem:[%s1 + $0x30] sm:$0xf]
    %v89 = vld [vmem:[%s1 + $0x34] sm:$0xf]
    %v90 = vld [vmem:[%s1 + $0x38] sm:$0xf]
    %v91 = vld [vmem:[%s1 + $0x3c] sm:$0xf]
    %v92 = vld [vmem:[%s2] sm:$0x1]
    %v94 = vlaneseq
    %v95 = vshrl.u32 %v94, 7
    %v96 = vsub.s32 0, %v95
    %v97 = vrot.slane %v92, %v96
    %v101 = vunpack.c.l.b16 %v74
    %v102 = vunpack.c.l.b16 %v75
    %v103 = vpack.c.b16 %v102, %v101
    %v121 = vunpack.c.l.b16 %v76
    %v122 = vunpack.c.l.b16 %v77
    %v123 = vunpack.c.l.b16 %v78
    %v124 = vunpack.c.l.b16 %v79
    %v125 = vunpack.c.l.b16 %v80
    %v126 = vunpack.c.l.b16 %v81
    %v127 = vunpack.c.l.b16 %v82
    %v128 = vunpack.c.l.b16 %v83
    %v129 = vunpack.c.l.b16 %v84
    %v130 = vunpack.c.l.b16 %v85
    %v131 = vunpack.c.l.b16 %v86
    %v132 = vunpack.c.l.b16 %v87
    %v133 = vunpack.c.l.b16 %v88
    %v134 = vunpack.c.l.b16 %v89
    %v135 = vunpack.c.l.b16 %v90
    %v136 = vunpack.c.l.b16 %v91
    %v137 = vpack.c.b16 %v122, %v121
    %v138 = vpack.c.b16 %v124, %v123
    %v139 = vpack.c.b16 %v126, %v125
    %v140 = vpack.c.b16 %v128, %v127
    %v141 = vpack.c.b16 %v130, %v129
    %v142 = vpack.c.b16 %v132, %v131
    %v143 = vpack.c.b16 %v134, %v133
    %v144 = vpack.c.b16 %v136, %v135
    %153 = vmatprep.subr.bf16.mxu0 0
    %154 = vmatpush1.bf16.msra.mxu0 %v144
    %155 = vmatprep.subr.bf16.mxu0 0
    %156 = vmatpush1.bf16.msra.mxu0 %v143
    %157 = vmatprep.subr.bf16.mxu0 0
    %158 = vmatpush1.bf16.msra.mxu0 %v142
    %159 = vmatprep.subr.bf16.mxu0 0
    %160 = vmatpush1.bf16.msra.mxu0 %v141
    %161 = vmatprep.subr.bf16.mxu0 0
    %162 = vmatpush1.bf16.msra.mxu0 %v140
    %163 = vmatprep.subr.bf16.mxu0 0
    %164 = vmatpush1.bf16.msra.mxu0 %v139
    %165 = vmatprep.subr.bf16.mxu0 0
    %166 = vmatpush1.bf16.msra.mxu0 %v138
    %167 = vmatprep.subr.bf16.mxu0 0
    %168 = vmatpush1.bf16.msra.mxu0 %v137
    %169 = vmatprep.subr.bf16.mxu0 0
    %170 = vmatpush2.bf16.msra.mxu0 0
    %171 = vmatprep.subr.bf16.mxu0 0
    %172 = vmatpush2.bf16.msra.mxu0 0
    %173 = vmatprep.subr.bf16.mxu0 0
    %174 = vmatpush2.bf16.msra.mxu0 0
    %175 = vmatprep.subr.bf16.mxu0 0
    %176 = vmatpush2.bf16.msra.mxu0 0
    %177 = vmatprep.subr.bf16.mxu0 0
    %178 = vmatpush2.bf16.msra.mxu0 0
    %179 = vmatprep.subr.bf16.mxu0 0
    %180 = vmatpush2.bf16.msra.mxu0 0
    %181 = vmatprep.subr.bf16.mxu0 0
    %182 = vmatpush2.bf16.msra.mxu0 0
    %183 = vmatprep.subr.bf16.mxu0 0
    %184 = vmatpush2.bf16.msra.mxu0 0
    %185 = vmatprep.mubr.bf16.mxu0 0
    %186 = vmatmul.mubr.bf16.gmra.mxu0 %v103
    %v187 = vpop.f32.mrf.mxu0
    %v188 = vadd.f32 %v97, %v187
    %v189 = vpop.f32.mrf.mxu0
    %v190 = vpop.f32.mrf.mxu0
    %v191 = vadd.f32 %v97, %v190
    %v192 = vpop.f32.mrf.mxu0
    %193 = vdwg.mxu0
    %v194 = vmax.f32 %v188, 0.0
    %v195 = vmax.f32 %v191, 0.0
    %v196 = vpack.c.bf16 %v195, %v194
    %v197 = vld [vmem:[#allocation2] sm:$0xf]
    %v198 = vld [vmem:[#allocation2 + $0x4] sm:$0xf]
    %v199 = vld [vmem:[#allocation2 + $0x8] sm:$0xf]
    %v200 = vld [vmem:[#allocation2 + $0xc] sm:$0xf]
    %v201 = vld [vmem:[#allocation2 + $0x10] sm:$0xf]
    %v202 = vld [vmem:[#allocation2 + $0x14] sm:$0xf]
    %v203 = vld [vmem:[#allocation2 + $0x18] sm:$0xf]
    %v204 = vld [vmem:[#allocation2 + $0x1c] sm:$0xf]
    %v205 = vld [vmem:[#allocation2 + $0x20] sm:$0xf]
    %v206 = vld [vmem:[#allocation2 + $0x24] sm:$0xf]
    %v207 = vld [vmem:[#allocation2 + $0x28] sm:$0xf]
    %v208 = vld [vmem:[#allocation2 + $0x2c] sm:$0xf]
    %v209 = vld [vmem:[#allocation2 + $0x30] sm:$0xf]
    %v210 = vld [vmem:[#allocation2 + $0x34] sm:$0xf]
    %v211 = vld [vmem:[#allocation2 + $0x38] sm:$0xf]
    %v212 = vld [vmem:[#allocation2 + $0x3c] sm:$0xf]
    %v213 = vld [vmem:[%s4] sm:$0x1]
    %v215 = vlaneseq
    %v216 = vshrl.u32 %v215, 7
    %v217 = vsub.s32 0, %v216
    %v218 = vrot.slane %v213, %v217
    %v236 = vunpack.c.l.b16 %v197
    %v237 = vunpack.c.l.b16 %v198
    %v238 = vunpack.c.l.b16 %v199
    %v239 = vunpack.c.l.b16 %v200
    %v240 = vunpack.c.l.b16 %v201
    %v241 = vunpack.c.l.b16 %v202
    %v242 = vunpack.c.l.b16 %v203
    %v243 = vunpack.c.l.b16 %v204
    %v244 = vunpack.c.l.b16 %v205
    %v245 = vunpack.c.l.b16 %v206
    %v246 = vunpack.c.l.b16 %v207
    %v247 = vunpack.c.l.b16 %v208
    %v248 = vunpack.c.l.b16 %v209
    %v249 = vunpack.c.l.b16 %v210
    %v250 = vunpack.c.l.b16 %v211
    %v251 = vunpack.c.l.b16 %v212
    %v252 = vpack.c.b16 %v237, %v236
    %v253 = vpack.c.b16 %v239, %v238
    %v254 = vpack.c.b16 %v241, %v240
    %v255 = vpack.c.b16 %v243, %v242
    %v256 = vpack.c.b16 %v245, %v244
    %v257 = vpack.c.b16 %v247, %v246
    %v258 = vpack.c.b16 %v249, %v248
    %v259 = vpack.c.b16 %v251, %v250
    %268 = vmatprep.subr.bf16.mxu0 0
    %269 = vmatpush1.bf16.msra.mxu0 %v259
    %270 = vmatprep.subr.bf16.mxu0 0
    %271 = vmatpush1.bf16.msra.mxu0 %v258
    %272 = vmatprep.subr.bf16.mxu0 0
    %273 = vmatpush1.bf16.msra.mxu0 %v257
    %274 = vmatprep.subr.bf16.mxu0 0
    %275 = vmatpush1.bf16.msra.mxu0 %v256
    %276 = vmatprep.subr.bf16.mxu0 0
    %277 = vmatpush1.bf16.msra.mxu0 %v255
    %278 = vmatprep.subr.bf16.mxu0 0
    %279 = vmatpush1.bf16.msra.mxu0 %v254
    %280 = vmatprep.subr.bf16.mxu0 0
    %281 = vmatpush1.bf16.msra.mxu0 %v253
    %282 = vmatprep.subr.bf16.mxu0 0
    %283 = vmatpush1.bf16.msra.mxu0 %v252
    %284 = vmatprep.subr.bf16.mxu0 0
    %285 = vmatpush2.bf16.msra.mxu0 0
    %286 = vmatprep.subr.bf16.mxu0 0
    %287 = vmatpush2.bf16.msra.mxu0 0
    %288 = vmatprep.subr.bf16.mxu0 0
    %289 = vmatpush2.bf16.msra.mxu0 0
    %290 = vmatprep.subr.bf16.mxu0 0
    %291 = vmatpush2.bf16.msra.mxu0 0
    %292 = vmatprep.subr.bf16.mxu0 0
    %293 = vmatpush2.bf16.msra.mxu0 0
    %294 = vmatprep.subr.bf16.mxu0 0
    %295 = vmatpush2.bf16.msra.mxu0 0
    %296 = vmatprep.subr.bf16.mxu0 0
    %297 = vmatpush2.bf16.msra.mxu0 0
    %298 = vmatprep.subr.bf16.mxu0 0
    %299 = vmatpush2.bf16.msra.mxu0 0
    %300 = vmatprep.mubr.bf16.mxu0 0
    %301 = vmatmul.mubr.bf16.gmra.mxu0 %v196
    %v302 = vpop.f32.mrf.mxu0
    %v303 = vadd.f32 %v218, %v302
    %v304 = vpop.f32.mrf.mxu0
    %v305 = vpop.f32.mrf.mxu0
    %v306 = vadd.f32 %v218, %v305
    %v307 = vpop.f32.mrf.mxu0
    %308 = vdwg.mxu0
    %v309 = vmax.f32 %v303, 0.0
    %v310 = vmax.f32 %v306, 0.0
    %v311 = vpack.c.bf16 %v310, %v309
    %v312 = vld [vmem:[#allocation4] sm:$0xf]
    %v313 = vld [vmem:[#allocation4 + $0x4] sm:$0xf]
    %v314 = vld [vmem:[#allocation4 + $0x8] sm:$0xf]
    %v315 = vld [vmem:[#allocation4 + $0xc] sm:$0xf]
    %v316 = vld [vmem:[#allocation4 + $0x10] sm:$0xf]
    %v317 = vld [vmem:[#allocation4 + $0x14] sm:$0xf]
    %v318 = vld [vmem:[#allocation4 + $0x18] sm:$0xf]
    %v319 = vld [vmem:[#allocation4 + $0x1c] sm:$0xf]
    %v320 = vld [vmem:[#allocation4 + $0x20] sm:$0xf]
    %v321 = vld [vmem:[#allocation4 + $0x24] sm:$0xf]
    %v322 = vld [vmem:[#allocation4 + $0x28] sm:$0xf]
    %v323 = vld [vmem:[#allocation4 + $0x2c] sm:$0xf]
    %v324 = vld [vmem:[#allocation4 + $0x30] sm:$0xf]
    %v325 = vld [vmem:[#allocation4 + $0x34] sm:$0xf]
    %v326 = vld [vmem:[#allocation4 + $0x38] sm:$0xf]
    %v327 = vld [vmem:[#allocation4 + $0x3c] sm:$0xf]
    %v328 = vld [vmem:[%s6] sm:$0x1]
    %v330 = vlaneseq
    %v331 = vshrl.u32 %v330, 7
    %v332 = vsub.s32 0, %v331
    %v333 = vrot.slane %v328, %v332
    %v351 = vunpack.c.l.b16 %v312
    %v352 = vunpack.c.l.b16 %v313
    %v353 = vunpack.c.l.b16 %v314
    %v354 = vunpack.c.l.b16 %v315
    %v355 = vunpack.c.l.b16 %v316
    %v356 = vunpack.c.l.b16 %v317
    %v357 = vunpack.c.l.b16 %v318
    %v358 = vunpack.c.l.b16 %v319
    %v359 = vunpack.c.l.b16 %v320
    %v360 = vunpack.c.l.b16 %v321
    %v361 = vunpack.c.l.b16 %v322
    %v362 = vunpack.c.l.b16 %v323
    %v363 = vunpack.c.l.b16 %v324
    %v364 = vunpack.c.l.b16 %v325
    %v365 = vunpack.c.l.b16 %v326
    %v366 = vunpack.c.l.b16 %v327
    %v367 = vpack.c.b16 %v352, %v351
    %v368 = vpack.c.b16 %v354, %v353
    %v369 = vpack.c.b16 %v356, %v355
    %v370 = vpack.c.b16 %v358, %v357
    %v371 = vpack.c.b16 %v360, %v359
    %v372 = vpack.c.b16 %v362, %v361
    %v373 = vpack.c.b16 %v364, %v363
    %v374 = vpack.c.b16 %v366, %v365
    %383 = vmatprep.subr.bf16.mxu0 0
    %384 = vmatpush1.bf16.msra.mxu0 %v374
    %385 = vmatprep.subr.bf16.mxu0 0
    %386 = vmatpush1.bf16.msra.mxu0 %v373
    %387 = vmatprep.subr.bf16.mxu0 0
    %388 = vmatpush1.bf16.msra.mxu0 %v372
    %389 = vmatprep.subr.bf16.mxu0 0
    %390 = vmatpush1.bf16.msra.mxu0 %v371
    %391 = vmatprep.subr.bf16.mxu0 0
    %392 = vmatpush1.bf16.msra.mxu0 %v370
    %393 = vmatprep.subr.bf16.mxu0 0
    %394 = vmatpush1.bf16.msra.mxu0 %v369
    %395 = vmatprep.subr.bf16.mxu0 0
    %396 = vmatpush1.bf16.msra.mxu0 %v368
    %397 = vmatprep.subr.bf16.mxu0 0
    %398 = vmatpush1.bf16.msra.mxu0 %v367
    %399 = vmatprep.subr.bf16.mxu0 0
    %400 = vmatpush2.bf16.msra.mxu0 0
    %401 = vmatprep.subr.bf16.mxu0 0
    %402 = vmatpush2.bf16.msra.mxu0 0
    %403 = vmatprep.subr.bf16.mxu0 0
    %404 = vmatpush2.bf16.msra.mxu0 0
    %405 = vmatprep.subr.bf16.mxu0 0
    %406 = vmatpush2.bf16.msra.mxu0 0
    %407 = vmatprep.subr.bf16.mxu0 0
    %408 = vmatpush2.bf16.msra.mxu0 0
    %409 = vmatprep.subr.bf16.mxu0 0
    %410 = vmatpush2.bf16.msra.mxu0 0
    %411 = vmatprep.subr.bf16.mxu0 0
    %412 = vmatpush2.bf16.msra.mxu0 0
    %413 = vmatprep.subr.bf16.mxu0 0
    %414 = vmatpush2.bf16.msra.mxu0 0
    %415 = vmatprep.mubr.bf16.mxu0 0
    %416 = vmatmul.mubr.bf16.gmra.mxu0 %v311
    %v417 = vpop.f32.mrf.mxu0
    %v418 = vadd.f32 %v333, %v417
    %v419 = vpop.f32.mrf.mxu0
    %v420 = vpop.f32.mrf.mxu0
    %v421 = vadd.f32 %v333, %v420
    %v422 = vpop.f32.mrf.mxu0
    %423 = vdwg.mxu0
    %v424 = vmax.f32 %v418, 0.0
    %v425 = vmax.f32 %v421, 0.0
    %v426 = vpack.c.bf16 %v425, %v424
    %v427 = vld [vmem:[#allocation6] sm:$0xf]
    %v428 = vld [vmem:[#allocation6 + $0x4] sm:$0xf]
    %v429 = vld [vmem:[#allocation6 + $0x8] sm:$0xf]
    %v430 = vld [vmem:[#allocation6 + $0xc] sm:$0xf]
    %v431 = vld [vmem:[#allocation6 + $0x10] sm:$0xf]
    %v432 = vld [vmem:[#allocation6 + $0x14] sm:$0xf]
    %v433 = vld [vmem:[#allocation6 + $0x18] sm:$0xf]
    %v434 = vld [vmem:[#allocation6 + $0x1c] sm:$0xf]
    %v435 = vld [vmem:[#allocation6 + $0x20] sm:$0xf]
    %v436 = vld [vmem:[#allocation6 + $0x24] sm:$0xf]
    %v437 = vld [vmem:[#allocation6 + $0x28] sm:$0xf]
    %v438 = vld [vmem:[#allocation6 + $0x2c] sm:$0xf]
    %v439 = vld [vmem:[#allocation6 + $0x30] sm:$0xf]
    %v440 = vld [vmem:[#allocation6 + $0x34] sm:$0xf]
    %v441 = vld [vmem:[#allocation6 + $0x38] sm:$0xf]
    %v442 = vld [vmem:[#allocation6 + $0x3c] sm:$0xf]
    %v443 = vld [vmem:[%s8] sm:$0x1]
    %v445 = vlaneseq
    %v446 = vshrl.u32 %v445, 7
    %v447 = vsub.s32 0, %v446
    %v448 = vrot.slane %v443, %v447
    %v466 = vunpack.c.l.b16 %v427
    %v467 = vunpack.c.l.b16 %v428
    %v468 = vunpack.c.l.b16 %v429
    %v469 = vunpack.c.l.b16 %v430
    %v470 = vunpack.c.l.b16 %v431
    %v471 = vunpack.c.l.b16 %v432
    %v472 = vunpack.c.l.b16 %v433
    %v473 = vunpack.c.l.b16 %v434
    %v474 = vunpack.c.l.b16 %v435
    %v475 = vunpack.c.l.b16 %v436
    %v476 = vunpack.c.l.b16 %v437
    %v477 = vunpack.c.l.b16 %v438
    %v478 = vunpack.c.l.b16 %v439
    %v479 = vunpack.c.l.b16 %v440
    %v480 = vunpack.c.l.b16 %v441
    %v481 = vunpack.c.l.b16 %v442
    %v482 = vpack.c.b16 %v467, %v466
    %v483 = vpack.c.b16 %v469, %v468
    %v484 = vpack.c.b16 %v471, %v470
    %v485 = vpack.c.b16 %v473, %v472
    %v486 = vpack.c.b16 %v475, %v474
    %v487 = vpack.c.b16 %v477, %v476
    %v488 = vpack.c.b16 %v479, %v478
    %v489 = vpack.c.b16 %v481, %v480
    %498 = vmatprep.subr.bf16.mxu0 0
    %499 = vmatpush1.bf16.msra.mxu0 %v489
    %500 = vmatprep.subr.bf16.mxu0 0
    %501 = vmatpush1.bf16.msra.mxu0 %v488
    %502 = vmatprep.subr.bf16.mxu0 0
    %503 = vmatpush1.bf16.msra.mxu0 %v487
    %504 = vmatprep.subr.bf16.mxu0 0
    %505 = vmatpush1.bf16.msra.mxu0 %v486
    %506 = vmatprep.subr.bf16.mxu0 0
    %507 = vmatpush1.bf16.msra.mxu0 %v485
    %508 = vmatprep.subr.bf16.mxu0 0
    %509 = vmatpush1.bf16.msra.mxu0 %v484
    %510 = vmatprep.subr.bf16.mxu0 0
    %511 = vmatpush1.bf16.msra.mxu0 %v483
    %512 = vmatprep.subr.bf16.mxu0 0
    %513 = vmatpush1.bf16.msra.mxu0 %v482
    %514 = vmatprep.subr.bf16.mxu0 0
    %515 = vmatpush2.bf16.msra.mxu0 0
    %516 = vmatprep.subr.bf16.mxu0 0
    %517 = vmatpush2.bf16.msra.mxu0 0
    %518 = vmatprep.subr.bf16.mxu0 0
    %519 = vmatpush2.bf16.msra.mxu0 0
    %520 = vmatprep.subr.bf16.mxu0 0
    %521 = vmatpush2.bf16.msra.mxu0 0
    %522 = vmatprep.subr.bf16.mxu0 0
    %523 = vmatpush2.bf16.msra.mxu0 0
    %524 = vmatprep.subr.bf16.mxu0 0
    %525 = vmatpush2.bf16.msra.mxu0 0
    %526 = vmatprep.subr.bf16.mxu0 0
    %527 = vmatpush2.bf16.msra.mxu0 0
    %528 = vmatprep.subr.bf16.mxu0 0
    %529 = vmatpush2.bf16.msra.mxu0 0
    %530 = vmatprep.mubr.bf16.mxu0 0
    %531 = vmatmul.mubr.bf16.gmra.mxu0 %v426
    %v532 = vpop.f32.mrf.mxu0
    %v533 = vadd.f32 %v448, %v532
    %v534 = vpop.f32.mrf.mxu0
    %v535 = vpop.f32.mrf.mxu0
    %v536 = vadd.f32 %v448, %v535
    %v537 = vpop.f32.mrf.mxu0
    %538 = vdwg.mxu0
    %539 = vst [vmem:[%s9] sm:$0xff] %v533
    %540 = vst [vmem:[%s9 + $0x8] sm:$0xff] %v536
    // Predicated region
    $region50: #{deep_mlp_pallas.1} parent=1 // pred_check
      _
    $region51: #{deep_mlp_pallas.1} parent=1 // pred_check_branch
      %542 = sbr.rel (0) target = $region53
    $region52: #{deep_mlp_pallas.1} parent=1 // pred_region
      _
    $region53: #{deep_mlp_pallas.1} parent=1 // pred_fallthru
      _
    // Predicated region
    $region54: #{deep_mlp_pallas.1} parent=1 // pred_check
      _
    $region55: #{deep_mlp_pallas.1} parent=1 // pred_check_branch
      %544 = sbr.rel (0) target = $region57
    $region56: #{deep_mlp_pallas.1} parent=1 // pred_region
      _
    $region57: #{deep_mlp_pallas.1} parent=1 // pred_fallthru
      _
    %545 = vsyncpa [#allocation3], 1
    %546 = vsyncpa [#allocation5], 1

</llo_original>
